<compile_context>
chip_gen: v7x
topology: tpu7x:2x2x1
jax: 0.10.0
libtpu: 0.0.40
codegen_flags: <defaults>
</compile_context>

<pallas_src>
import functools

import jax
import jax.numpy as jnp
from jax import lax
from jax.experimental import pallas as pl
from jax.experimental.pallas import tpu as pltpu


def _round_up(x, m):
    return -(-x // m) * m


# ---------------------------------------------------------------------------
# Kernel 1: channel softmax + packed sort keys + per-tile foreground totals
# ---------------------------------------------------------------------------
def _softmax_errors_kernel(logits_ref, labels_ref, key_ref, gts_ref, *,
                           ignore_index, hw):
    i = pl.program_id(1)                                   # tile index within the image
    x = logits_ref[...].astype(jnp.float32)                # (C, TN)
    C, TN = x.shape
    m = jnp.max(x, axis=0, keepdims=True)
    e = jnp.exp(x - m)
    p = e * pl.reciprocal(jnp.sum(e, axis=0, keepdims=True), approx=False)

    labels = labels_ref[...]                               # (1, TN) int32
    lane = lax.broadcasted_iota(jnp.int32, (1, TN), 1) + i * TN
    # Mask out-of-image lanes (edge tiles) and ignore_index pixels; any NaN/garbage
    # from padded reads is confined to those columns and zeroed by the where().
    valid = jnp.logical_and(labels != ignore_index, lane < hw)     # (1, TN)
    cls = lax.broadcasted_iota(jnp.int32, (C, TN), 0)
    is_fg = jnp.logical_and(labels == cls, valid)          # (C, TN) bool
    fg = jnp.where(is_fg, 1.0, 0.0)
    err = jnp.where(valid, jnp.abs(fg - p), 0.0)

    # Pack fg into the mantissa LSB of err (err >= 0): single f32 sort operand and a
    # single kernel-2 input stream.  <=1 ulp perturbation; tied-err groups telescope,
    # so the loss is unchanged (revalidated against the reference below).
    bits = jnp.bitwise_or(
        jnp.bitwise_and(pltpu.bitcast(err, jnp.uint32), jnp.uint32(0xFFFFFFFE)),
        jnp.where(is_fg, jnp.uint32(1), jnp.uint32(0)))
    key_ref[...] = -pltpu.bitcast(bits, jnp.float32)       # ascending sort == err descending

    # Per-tile foreground totals -> lane 0 of a lane-aligned (C, 128) block; the tiny
    # (C, n_tiles*128) array is reduced to (C, 1) in glue (no fg re-read from HBM).
    tile_gts = jnp.sum(fg, axis=1, keepdims=True)          # (C, 1)
    lane128 = lax.broadcasted_iota(jnp.int32, (C, 128), 1)
    gts_ref[...] = jnp.where(lane128 == 0, tile_gts, 0.0)


# ---------------------------------------------------------------------------
# Kernel 2: Lovasz gradient + per-class loss, carried scan over sorted tiles
# ---------------------------------------------------------------------------
def _lovasz_scan_kernel(gts_ref, key_ref, out_ref, cumfg_ref, loss_ref):
    j = pl.program_id(0)
    C, T = key_ref.shape

    @pl.when(j == 0)
    def _init():
        cumfg_ref[...] = jnp.zeros_like(cumfg_ref)
        loss_ref[...] = jnp.zeros_like(loss_ref)

    bits = pltpu.bitcast(key_ref[...], jnp.uint32)         # stored as -err, LSB = fg
    fg = jnp.bitwise_and(bits, jnp.uint32(1)).astype(jnp.float32)
    neg_err = pltpu.bitcast(jnp.bitwise_and(bits, jnp.uint32(0xFFFFFFFE)),
                            jnp.float32)                   # == -err (LSB masked off)
    gts = gts_ref[...]                                     # (C, 1) true per-class totals

    col = lax.broadcasted_iota(jnp.int32, (C, T), 1)

    # In-tile inclusive prefix sum of fg along lanes: Hillis-Steele scan, log2(T)
    # steps of XLU roll + masked VPU add (T static -> unrolled at trace time).
    local_cum = fg
    d = 1
    while d < T:
        shifted = pltpu.roll(local_cum, shift=d, axis=1)
        local_cum = local_cum + jnp.where(col >= d, shifted, 0.0)
        d *= 2

    carry = cumfg_ref[...]                                 # fg cumsum of previous tiles
    cum_fg = carry + local_cum                             # global inclusive cumsum F_i
    pos = (col + j * T + 1).astype(jnp.float32)            # global 1-based position P_i

    # jaccard_i = P_i / (gts + P_i - F_i);  grad_i = jaccard_i - jaccard_{i-1}
    # (jaccard_{i-1} rebuilt elementwise from (P_i - 1, F_i - fg_i): no lane shift,
    #  no cross-tile jaccard carry).
    jac = pos * pl.reciprocal(gts + pos - cum_fg, approx=False)
    pos_p = pos - 1.0
    cum_p = cum_fg - fg
    jac_p = jnp.where(pos_p > 0.0,
                      pos_p * pl.reciprocal(gts + pos_p - cum_p, approx=False),
                      0.0)

    # err * (jac - jac_p) with the stored sign folded in: -err * (jac_p - jac).
    loss_ref[...] = loss_ref[...] + jnp.sum(neg_err * (jac_p - jac), axis=1, keepdims=True)
    cumfg_ref[...] = carry + jnp.sum(fg, axis=1, keepdims=True)

    @pl.when(j == pl.num_programs(0) - 1)
    def _finalize():
        present = jnp.where(gts > 0.0, 1.0, 0.0)           # classes='present'
        n_present = jnp.sum(present)
        total = jnp.sum(loss_ref[...] * present)
        mean = jnp.where(n_present > 0.0, total / jnp.maximum(n_present, 1.0), 0.0)
        out_ref[...] = jnp.broadcast_to(mean, (1, 1))


@functools.partial(jax.jit, static_argnames="ignore_index")
def lovasz_softmax_loss(output, target, ignore_index=255):
    """output: (B, C, H, W) float logits (NCHW); target: (B, H, W) int labels."""
    B, C, H, W = output.shape
    HW = H * W

    # Lane-tile width: as large as possible to amortize the ~0.35us/step grid overhead,
    # capped by a v7x-safe VMEM budget (double-buffered in+out bytes per step <~ 12 MiB
    # out of the 32 MiB scoped limit shared by every generation).
    vmem_budget = 12 * 1024 * 1024
    per_lane = 2 * (4 * C + 4 + 4 * C)       # 2 bufs x (logits + labels + packed key)/lane
    tn = min(16384, vmem_budget // per_lane, _round_up(HW, 128))
    TN = int(max(128, (tn // 128) * 128))
    tiles_per_b = int(pl.cdiv(HW, TN))
    HW_pad = tiles_per_b * TN
    N_pad = B * HW_pad
    n_tiles = B * tiles_per_b

    # Free reshapes only (no transpose / pad / concat HBM passes).
    logits3 = output.reshape(B, C, HW)
    labels3 = target.reshape(B, 1, HW).astype(jnp.int32)

    key, gts_part = pl.pallas_call(
        functools.partial(_softmax_errors_kernel, ignore_index=ignore_index, hw=HW),
        out_shape=(jax.ShapeDtypeStruct((C, N_pad), jnp.float32),
                   jax.ShapeDtypeStruct((C, n_tiles * 128), jnp.float32)),
        grid=(B, tiles_per_b),
        in_specs=[pl.BlockSpec((None, C, TN), lambda b, i: (b, 0, i)),
                  pl.BlockSpec((None, 1, TN), lambda b, i: (b, 0, i))],
        out_specs=(pl.BlockSpec((C, TN), lambda b, i: (0, b * tiles_per_b + i)),
                   pl.BlockSpec((C, 128), lambda b, i: (0, b * tiles_per_b + i))),
        compiler_params=pltpu.CompilerParams(
            dimension_semantics=("parallel", "parallel"),  # independent tiles (2 TCs on v7x)
            vmem_limit_bytes=32 * 1024 * 1024),
    )(logits3, labels3)

    gts = jnp.sum(gts_part, axis=1, keepdims=True)          # (C, 1) per-class fg totals

    # TODO(synk): no Pallas TPU sort primitive -- per-class descending error sort is a
    # single-operand lax.sort on the already-negated, fg-LSB-packed keys.
    key_sorted = lax.sort(key, dimension=1)

    # Kernel-2 tile: merge consecutive sorted tiles while they still divide N_pad and
    # fit VMEM -- fewer steps for the serial (carried) stage.
    t2_cap = min(32768, vmem_budget // (8 * C))
    k = 1
    while n_tiles % (2 * k) == 0 and TN * 2 * k <= t2_cap:
        k *= 2
    T2 = TN * k
    n2 = n_tiles // k

    loss = pl.pallas_call(
        _lovasz_scan_kernel,
        out_shape=jax.ShapeDtypeStruct((1, 1), jnp.float32),
        grid=(n2,),
        in_specs=[pl.BlockSpec((C, 1), lambda j: (0, 0)),     # gts, stays resident
                  pl.BlockSpec((C, T2), lambda j: (0, j))],   # sorted packed keys (f32)
        out_specs=pl.BlockSpec((1, 1), lambda j: (0, 0)),
        scratch_shapes=[pltpu.VMEM((C, 1), jnp.float32),      # running fg cumsum carry
                        pltpu.VMEM((C, 1), jnp.float32)],     # per-class loss accumulator
        compiler_params=pltpu.CompilerParams(
            dimension_semantics=("arbitrary",),               # carried scan over tiles
            vmem_limit_bytes=32 * 1024 * 1024),
    )(gts, key_sorted)
    return loss[0, 0]


def _reference_loss(output, target, ignore_index=255):
    """Pure-JAX mirror of the original PyTorch lovasz_softmax (per_image=False, 'present')."""
    B, C, H, W = output.shape
    probas = jax.nn.softmax(output.astype(jnp.float32), axis=1)
    probas = jnp.transpose(probas, (0, 2, 3, 1)).reshape(-1, C)
    labels = target.reshape(-1)
    valid = labels != ignore_index
    probas = probas[valid]
    labels = labels[valid]
    losses = []
    for c in range(C):
        fg = (labels == c).astype(jnp.float32)
        if float(fg.sum()) == 0:
            continue
        errors = jnp.abs(fg - probas[:, c])
        order = jnp.argsort(-errors)
        errors_sorted = errors[order]
        fg_sorted = fg[order]
        gts = fg_sorted.sum()
        inter = gts - jnp.cumsum(fg_sorted)
        union = gts + jnp.cumsum(1.0 - fg_sorted)
        jacc = 1.0 - inter / union
        jacc = jnp.concatenate([jacc[:1], jacc[1:] - jacc[:-1]])
        losses.append(jnp.dot(errors_sorted, jacc))
    return sum(losses) / len(losses)


if __name__ == "__main__":
    key = jax.random.PRNGKey(0)
    k1, k2 = jax.random.split(key)
    B, C, H, W = 2, 4, 16, 16
    output = jax.random.normal(k1, (B, C, H, W), dtype=jnp.float32)
    target = jax.random.randint(k2, (B, H, W), 0, C, dtype=jnp.int32)

    loss = lovasz_softmax_loss(output, target, ignore_index=255)
    jax.block_until_ready(loss)
    ref = _reference_loss(output, target, ignore_index=255)
    assert jnp.allclose(loss, ref, rtol=1e-4, atol=1e-5), (float(loss), float(ref))

    # Exercise the ignore_index path as well.
    target_ig = target.at[:, :2, :].set(255)
    loss_ig = lovasz_softmax_loss(output, target_ig, ignore_index=255)
    jax.block_until_ready(loss_ig)
    ref_ig = _reference_loss(output, target_ig, ignore_index=255)
    assert jnp.allclose(loss_ig, ref_ig, rtol=1e-4, atol=1e-5), (float(loss_ig), float(ref_ig))

    print("KERNEL_OK")
</pallas_src>

<mosaic_0001>
module attributes {stable_mosaic.version = 11 : i64} {
  func.func @_softmax_errors_kernel(%arg0: i32, %arg1: i32, %arg2: memref<1x4x256xf32, #tpu.memory_space<vmem>>, %arg3: memref<1x1x256xi32, #tpu.memory_space<vmem>>, %arg4: memref<4x256xf32, #tpu.memory_space<vmem>>, %arg5: memref<4x128xf32, #tpu.memory_space<vmem>>) attributes {dimension_semantics = [#tpu.dimension_semantics<parallel>, #tpu.dimension_semantics<parallel>], iteration_bounds = array<i64: 2, 1>, scalar_prefetch = 0 : i64, scratch_operands = 0 : i64, tpu.core_type = #tpu.core_type<tc>, window_params = [{transform_indices = @transform_0, window_bounds = array<i64: 1, 4, 256>}, {transform_indices = @transform_1, window_bounds = array<i64: 1, 1, 256>}, {transform_indices = @transform_2, window_bounds = array<i64: 4, 256>}, {transform_indices = @transform_3, window_bounds = array<i64: 4, 128>}]} {
    %c0 = arith.constant 0 : index
    %c0_0 = arith.constant 0 : index
    %c0_1 = arith.constant 0 : index
    %0 = vector.load %arg2[%c0, %c0_0, %c0_1] : memref<1x4x256xf32, #tpu.memory_space<vmem>>, vector<1x4x256xf32>
    %1 = vector.shape_cast %0 : vector<1x4x256xf32> to vector<4x256xf32>
    %cst = arith.constant dense<0xFF800000> : vector<256xf32>
    %2 = vector.multi_reduction <maximumf>, %1, %cst [0] : vector<4x256xf32> to vector<256xf32>
    %3 = vector.shape_cast %2 : vector<256xf32> to vector<1x256xf32>
    %4 = vector.broadcast %3 : vector<1x256xf32> to vector<4x256xf32>
    %5 = arith.subf %1, %4 : vector<4x256xf32>
    %6 = math.exp %5 : vector<4x256xf32>
    %cst_2 = arith.constant dense<0.000000e+00> : vector<256xf32>
    %7 = vector.multi_reduction <add>, %6, %cst_2 [0] : vector<4x256xf32> to vector<256xf32>
    %8 = vector.shape_cast %7 : vector<256xf32> to vector<1x256xf32>
    %9 = tpu.reciprocal %8 : vector<1x256xf32> -> vector<1x256xf32>
    %10 = vector.broadcast %9 : vector<1x256xf32> to vector<4x256xf32>
    %11 = arith.mulf %6, %10 : vector<4x256xf32>
    %c0_3 = arith.constant 0 : index
    %c0_4 = arith.constant 0 : index
    %c0_5 = arith.constant 0 : index
    %12 = vector.load %arg3[%c0_3, %c0_4, %c0_5] : memref<1x1x256xi32, #tpu.memory_space<vmem>>, vector<1x1x256xi32>
    %13 = vector.shape_cast %12 : vector<1x1x256xi32> to vector<1x256xi32>
    %14 = tpu.iota {dimensions = array<i32: 1>} : vector<1x256xi32>
    %c256_i32 = arith.constant 256 : i32
    %15 = arith.muli %arg1, %c256_i32 : i32
    %16 = vector.broadcast %15 : i32 to vector<1x256xi32>
    %17 = arith.addi %14, %16 : vector<1x256xi32>
    %c255_i32 = arith.constant 255 : i32
    %18 = vector.broadcast %c255_i32 : i32 to vector<1x256xi32>
    %19 = arith.cmpi ne, %13, %18 : vector<1x256xi32>
    %c256_i32_6 = arith.constant 256 : i32
    %20 = vector.broadcast %c256_i32_6 : i32 to vector<1x256xi32>
    %21 = arith.cmpi slt, %17, %20 : vector<1x256xi32>
    %22 = arith.andi %19, %21 : vector<1x256xi1>
    %23 = tpu.iota {dimensions = array<i32: 0>} : vector<4x256xi32>
    %24 = vector.broadcast %13 : vector<1x256xi32> to vector<4x256xi32>
    %25 = arith.cmpi eq, %24, %23 : vector<4x256xi32>
    %26 = vector.broadcast %22 : vector<1x256xi1> to vector<4x256xi1>
    %27 = arith.andi %25, %26 : vector<4x256xi1>
    %cst_7 = arith.constant 1.000000e+00 : f32
    %cst_8 = arith.constant 0.000000e+00 : f32
    %28 = vector.broadcast %cst_7 : f32 to vector<4x256xf32>
    %29 = vector.broadcast %cst_8 : f32 to vector<4x256xf32>
    %30 = arith.select %27, %28, %29 : vector<4x256xi1>, vector<4x256xf32>
    %31 = arith.subf %30, %11 : vector<4x256xf32>
    %32 = math.absf %31 : vector<4x256xf32>
    %cst_9 = arith.constant 0.000000e+00 : f32
    %33 = vector.shape_cast %22 : vector<1x256xi1> to vector<1x256xi1>
    %34 = vector.broadcast %33 : vector<1x256xi1> to vector<4x256xi1>
    %35 = vector.broadcast %cst_9 : f32 to vector<4x256xf32>
    %36 = arith.select %34, %32, %35 : vector<4x256xi1>, vector<4x256xf32>
    %37 = tpu.bitcast %36 : vector<4x256xf32> -> vector<4x256xi32>
    %c-2_i32 = arith.constant -2 : i32
    %38 = vector.broadcast %c-2_i32 : i32 to vector<4x256xi32>
    %39 = arith.andi %37, %38 : vector<4x256xi32>
    %c1_i32 = arith.constant 1 : i32
    %c0_i32 = arith.constant 0 : i32
    %40 = vector.broadcast %c1_i32 : i32 to vector<4x256xi32>
    %41 = vector.broadcast %c0_i32 : i32 to vector<4x256xi32>
    %42 = arith.select %27, %40, %41 : vector<4x256xi1>, vector<4x256xi32>
    %43 = arith.ori %39, %42 : vector<4x256xi32>
    %44 = tpu.bitcast %43 : vector<4x256xi32> -> vector<4x256xf32>
    %cst_10 = arith.constant 0.000000e+00 : f32
    %45 = vector.broadcast %cst_10 : f32 to vector<4x256xf32>
    %46 = arith.subf %45, %44 : vector<4x256xf32>
    %c0_11 = arith.constant 0 : index
    %c0_12 = arith.constant 0 : index
    %47 = vector.load %arg4[%c0_11, %c0_12] : memref<4x256xf32, #tpu.memory_space<vmem>>, vector<4x256xf32>
    tpu.vector_store %arg4[%c0_11, %c0_12], %46 {strides = array<i32>} : memref<4x256xf32, #tpu.memory_space<vmem>>, vector<4x256xf32>,
    %cst_13 = arith.constant dense<0.000000e+00> : vector<4xf32>
    %48 = vector.multi_reduction <add>, %30, %cst_13 [1] : vector<4x256xf32> to vector<4xf32>
    %49 = vector.shape_cast %48 : vector<4xf32> to vector<4x1xf32>
    %50 = tpu.iota {dimensions = array<i32: 1>} : vector<4x128xi32>
    %c0_i32_14 = arith.constant 0 : i32
    %51 = vector.broadcast %c0_i32_14 : i32 to vector<4x128xi32>
    %52 = arith.cmpi eq, %50, %51 : vector<4x128xi32>
    %cst_15 = arith.constant 0.000000e+00 : f32
    %53 = vector.shape_cast %49 : vector<4x1xf32> to vector<4x1xf32>
    %54 = vector.broadcast %53 : vector<4x1xf32> to vector<4x128xf32>
    %55 = vector.broadcast %cst_15 : f32 to vector<4x128xf32>
    %56 = arith.select %52, %54, %55 : vector<4x128xi1>, vector<4x128xf32>
    %c0_16 = arith.constant 0 : index
    %c0_17 = arith.constant 0 : index
    %57 = vector.load %arg5[%c0_16, %c0_17] : memref<4x128xf32, #tpu.memory_space<vmem>>, vector<4x128xf32>
    tpu.vector_store %arg5[%c0_16, %c0_17], %56 {strides = array<i32>} : memref<4x128xf32, #tpu.memory_space<vmem>>, vector<4x128xf32>,
    return
  }
  func.func @transform_0(%arg0: i32, %arg1: i32) -> (i32, i32, i32) {
    %c0_i32 = arith.constant 0 : i32
    %c0_i32_0 = arith.constant 0 : i32
    return %arg0, %c0_i32, %arg1 : i32, i32, i32
  }
  func.func @transform_1(%arg0: i32, %arg1: i32) -> (i32, i32, i32) {
    %c0_i32 = arith.constant 0 : i32
    %c0_i32_0 = arith.constant 0 : i32
    return %arg0, %c0_i32, %arg1 : i32, i32, i32
  }
  func.func @transform_2(%arg0: i32, %arg1: i32) -> (i32, i32) {
    %c1_i32 = arith.constant 1 : i32
    %0 = arith.muli %arg0, %c1_i32 : i32
    %1 = arith.addi %0, %arg1 : i32
    %c0_i32 = arith.constant 0 : i32
    %c0_i32_0 = arith.constant 0 : i32
    return %c0_i32, %1 : i32, i32
  }
  func.func @transform_3(%arg0: i32, %arg1: i32) -> (i32, i32) {
    %c1_i32 = arith.constant 1 : i32
    %0 = arith.muli %arg0, %c1_i32 : i32
    %1 = arith.addi %0, %arg1 : i32
    %c0_i32 = arith.constant 0 : i32
    %c0_i32_0 = arith.constant 0 : i32
    return %c0_i32, %1 : i32, i32
  }
}

module attributes {stable_mosaic.version = 11 : i64} {
  func.func @_lovasz_scan_kernel(%arg0: i32, %arg1: memref<4x1xf32, #tpu.memory_space<vmem>>, %arg2: memref<4x512xf32, #tpu.memory_space<vmem>>, %arg3: memref<1x1xf32, #tpu.memory_space<vmem>>, %arg4: memref<4x1xf32, #tpu.memory_space<vmem>>, %arg5: memref<4x1xf32, #tpu.memory_space<vmem>>) attributes {dimension_semantics = [#tpu.dimension_semantics<arbitrary>], iteration_bounds = array<i64: 1>, scalar_prefetch = 0 : i64, scratch_operands = 2 : i64, tpu.core_type = #tpu.core_type<tc>, window_params = [{pipeline_mode = #tpu.pipeline_mode<synchronous>, transform_indices = @transform_0, window_bounds = array<i64: 4, 1>}, {transform_indices = @transform_1, window_bounds = array<i64: 4, 512>}, {pipeline_mode = #tpu.pipeline_mode<synchronous>, transform_indices = @transform_2, window_bounds = array<i64: 1, 1>}]} {
    %c0_i32 = arith.constant 0 : i32
    %0 = arith.cmpi eq, %arg0, %c0_i32 : i32
    %1 = arith.extui %0 : i1 to i32
    %c0_i32_0 = arith.constant 0 : i32
    %2 = arith.cmpi ne, %1, %c0_i32_0 : i32
    scf.if %2 {
      %cst_38 = arith.constant 0.000000e+00 : f32
      %107 = vector.broadcast %cst_38 : f32 to vector<4x1xf32>
      %c0_39 = arith.constant 0 : index
      %c0_40 = arith.constant 0 : index
      %108 = vector.load %arg4[%c0_39, %c0_40] : memref<4x1xf32, #tpu.memory_space<vmem>>, vector<4x1xf32>
      tpu.vector_store %arg4[%c0_39, %c0_40], %107 {strides = array<i32>} : memref<4x1xf32, #tpu.memory_space<vmem>>, vector<4x1xf32>,
      %cst_41 = arith.constant 0.000000e+00 : f32
      %109 = vector.broadcast %cst_41 : f32 to vector<4x1xf32>
      %c0_42 = arith.constant 0 : index
      %c0_43 = arith.constant 0 : index
      %110 = vector.load %arg5[%c0_42, %c0_43] : memref<4x1xf32, #tpu.memory_space<vmem>>, vector<4x1xf32>
      tpu.vector_store %arg5[%c0_42, %c0_43], %109 {strides = array<i32>} : memref<4x1xf32, #tpu.memory_space<vmem>>, vector<4x1xf32>,
    } else {
    }
    %c0 = arith.constant 0 : index
    %c0_1 = arith.constant 0 : index
    %3 = vector.load %arg2[%c0, %c0_1] : memref<4x512xf32, #tpu.memory_space<vmem>>, vector<4x512xf32>
    %4 = tpu.bitcast %3 : vector<4x512xf32> -> vector<4x512xi32>
    %c1_i32 = arith.constant 1 : i32
    %5 = vector.broadcast %c1_i32 : i32 to vector<4x512xi32>
    %6 = arith.andi %4, %5 : vector<4x512xi32>
    %7 = arith.uitofp %6 : vector<4x512xi32> to vector<4x512xf32>
    %c-2_i32 = arith.constant -2 : i32
    %8 = vector.broadcast %c-2_i32 : i32 to vector<4x512xi32>
    %9 = arith.andi %4, %8 : vector<4x512xi32>
    %10 = tpu.bitcast %9 : vector<4x512xi32> -> vector<4x512xf32>
    %c0_2 = arith.constant 0 : index
    %c0_3 = arith.constant 0 : index
    %11 = vector.load %arg1[%c0_2, %c0_3] : memref<4x1xf32, #tpu.memory_space<vmem>>, vector<4x1xf32>
    %12 = tpu.iota {dimensions = array<i32: 1>} : vector<4x512xi32>
    %c1_i32_4 = arith.constant 1 : i32
    %13 = tpu.dynamic_rotate %7 by %c1_i32_4 dim 1 : vector<4x512xf32>, i32 -> vector<4x512xf32>
    %c1_i32_5 = arith.constant 1 : i32
    %14 = vector.broadcast %c1_i32_5 : i32 to vector<4x512xi32>
    %15 = arith.cmpi sge, %12, %14 : vector<4x512xi32>
    %cst = arith.constant 0.000000e+00 : f32
    %16 = vector.broadcast %cst : f32 to vector<4x512xf32>
    %17 = arith.select %15, %13, %16 : vector<4x512xi1>, vector<4x512xf32>
    %18 = arith.addf %7, %17 : vector<4x512xf32>
    %c2_i32 = arith.constant 2 : i32
    %19 = tpu.dynamic_rotate %18 by %c2_i32 dim 1 : vector<4x512xf32>, i32 -> vector<4x512xf32>
    %c2_i32_6 = arith.constant 2 : i32
    %20 = vector.broadcast %c2_i32_6 : i32 to vector<4x512xi32>
    %21 = arith.cmpi sge, %12, %20 : vector<4x512xi32>
    %cst_7 = arith.constant 0.000000e+00 : f32
    %22 = vector.broadcast %cst_7 : f32 to vector<4x512xf32>
    %23 = arith.select %21, %19, %22 : vector<4x512xi1>, vector<4x512xf32>
    %24 = arith.addf %18, %23 : vector<4x512xf32>
    %c4_i32 = arith.constant 4 : i32
    %25 = tpu.dynamic_rotate %24 by %c4_i32 dim 1 : vector<4x512xf32>, i32 -> vector<4x512xf32>
    %c4_i32_8 = arith.constant 4 : i32
    %26 = vector.broadcast %c4_i32_8 : i32 to vector<4x512xi32>
    %27 = arith.cmpi sge, %12, %26 : vector<4x512xi32>
    %cst_9 = arith.constant 0.000000e+00 : f32
    %28 = vector.broadcast %cst_9 : f32 to vector<4x512xf32>
    %29 = arith.select %27, %25, %28 : vector<4x512xi1>, vector<4x512xf32>
    %30 = arith.addf %24, %29 : vector<4x512xf32>
    %c8_i32 = arith.constant 8 : i32
    %31 = tpu.dynamic_rotate %30 by %c8_i32 dim 1 : vector<4x512xf32>, i32 -> vector<4x512xf32>
    %c8_i32_10 = arith.constant 8 : i32
    %32 = vector.broadcast %c8_i32_10 : i32 to vector<4x512xi32>
    %33 = arith.cmpi sge, %12, %32 : vector<4x512xi32>
    %cst_11 = arith.constant 0.000000e+00 : f32
    %34 = vector.broadcast %cst_11 : f32 to vector<4x512xf32>
    %35 = arith.select %33, %31, %34 : vector<4x512xi1>, vector<4x512xf32>
    %36 = arith.addf %30, %35 : vector<4x512xf32>
    %c16_i32 = arith.constant 16 : i32
    %37 = tpu.dynamic_rotate %36 by %c16_i32 dim 1 : vector<4x512xf32>, i32 -> vector<4x512xf32>
    %c16_i32_12 = arith.constant 16 : i32
    %38 = vector.broadcast %c16_i32_12 : i32 to vector<4x512xi32>
    %39 = arith.cmpi sge, %12, %38 : vector<4x512xi32>
    %cst_13 = arith.constant 0.000000e+00 : f32
    %40 = vector.broadcast %cst_13 : f32 to vector<4x512xf32>
    %41 = arith.select %39, %37, %40 : vector<4x512xi1>, vector<4x512xf32>
    %42 = arith.addf %36, %41 : vector<4x512xf32>
    %c32_i32 = arith.constant 32 : i32
    %43 = tpu.dynamic_rotate %42 by %c32_i32 dim 1 : vector<4x512xf32>, i32 -> vector<4x512xf32>
    %c32_i32_14 = arith.constant 32 : i32
    %44 = vector.broadcast %c32_i32_14 : i32 to vector<4x512xi32>
    %45 = arith.cmpi sge, %12, %44 : vector<4x512xi32>
    %cst_15 = arith.constant 0.000000e+00 : f32
    %46 = vector.broadcast %cst_15 : f32 to vector<4x512xf32>
    %47 = arith.select %45, %43, %46 : vector<4x512xi1>, vector<4x512xf32>
    %48 = arith.addf %42, %47 : vector<4x512xf32>
    %c64_i32 = arith.constant 64 : i32
    %49 = tpu.dynamic_rotate %48 by %c64_i32 dim 1 : vector<4x512xf32>, i32 -> vector<4x512xf32>
    %c64_i32_16 = arith.constant 64 : i32
    %50 = vector.broadcast %c64_i32_16 : i32 to vector<4x512xi32>
    %51 = arith.cmpi sge, %12, %50 : vector<4x512xi32>
    %cst_17 = arith.constant 0.000000e+00 : f32
    %52 = vector.broadcast %cst_17 : f32 to vector<4x512xf32>
    %53 = arith.select %51, %49, %52 : vector<4x512xi1>, vector<4x512xf32>
    %54 = arith.addf %48, %53 : vector<4x512xf32>
    %c128_i32 = arith.constant 128 : i32
    %55 = tpu.dynamic_rotate %54 by %c128_i32 dim 1 : vector<4x512xf32>, i32 -> vector<4x512xf32>
    %c128_i32_18 = arith.constant 128 : i32
    %56 = vector.broadcast %c128_i32_18 : i32 to vector<4x512xi32>
    %57 = arith.cmpi sge, %12, %56 : vector<4x512xi32>
    %cst_19 = arith.constant 0.000000e+00 : f32
    %58 = vector.broadcast %cst_19 : f32 to vector<4x512xf32>
    %59 = arith.select %57, %55, %58 : vector<4x512xi1>, vector<4x512xf32>
    %60 = arith.addf %54, %59 : vector<4x512xf32>
    %c256_i32 = arith.constant 256 : i32
    %61 = tpu.dynamic_rotate %60 by %c256_i32 dim 1 : vector<4x512xf32>, i32 -> vector<4x512xf32>
    %c256_i32_20 = arith.constant 256 : i32
    %62 = vector.broadcast %c256_i32_20 : i32 to vector<4x512xi32>
    %63 = arith.cmpi sge, %12, %62 : vector<4x512xi32>
    %cst_21 = arith.constant 0.000000e+00 : f32
    %64 = vector.broadcast %cst_21 : f32 to vector<4x512xf32>
    %65 = arith.select %63, %61, %64 : vector<4x512xi1>, vector<4x512xf32>
    %66 = arith.addf %60, %65 : vector<4x512xf32>
    %c0_22 = arith.constant 0 : index
    %c0_23 = arith.constant 0 : index
    %67 = vector.load %arg4[%c0_22, %c0_23] : memref<4x1xf32, #tpu.memory_space<vmem>>, vector<4x1xf32>
    %68 = vector.broadcast %67 : vector<4x1xf32> to vector<4x512xf32>
    %69 = arith.addf %68, %66 : vector<4x512xf32>
    %c512_i32 = arith.constant 512 : i32
    %70 = arith.muli %arg0, %c512_i32 : i32
    %71 = vector.broadcast %70 : i32 to vector<4x512xi32>
    %72 = arith.addi %12, %71 : vector<4x512xi32>
    %c1_i32_24 = arith.constant 1 : i32
    %73 = vector.broadcast %c1_i32_24 : i32 to vector<4x512xi32>
    %74 = arith.addi %72, %73 : vector<4x512xi32>
    %75 = arith.sitofp %74 : vector<4x512xi32> to vector<4x512xf32>
    %76 = vector.broadcast %11 : vector<4x1xf32> to vector<4x512xf32>
    %77 = arith.addf %76, %75 : vector<4x512xf32>
    %78 = arith.subf %77, %69 : vector<4x512xf32>
    %79 = tpu.reciprocal %78 : vector<4x512xf32> -> vector<4x512xf32>
    %80 = arith.mulf %75, %79 : vector<4x512xf32>
    %cst_25 = arith.constant 1.000000e+00 : f32
    %81 = vector.broadcast %cst_25 : f32 to vector<4x512xf32>
    %82 = arith.subf %75, %81 : vector<4x512xf32>
    %83 = arith.subf %69, %7 : vector<4x512xf32>
    %cst_26 = arith.constant 0.000000e+00 : f32
    %84 = vector.broadcast %cst_26 : f32 to vector<4x512xf32>
    %85 = arith.cmpf ogt, %82, %84 : vector<4x512xf32>
    %86 = vector.broadcast %11 : vector<4x1xf32> to vector<4x512xf32>
    %87 = arith.addf %86, %82 : vector<4x512xf32>
    %88 = arith.subf %87, %83 : vector<4x512xf32>
    %89 = tpu.reciprocal %88 : vector<4x512xf32> -> vector<4x512xf32>
    %90 = arith.mulf %82, %89 : vector<4x512xf32>
    %cst_27 = arith.constant 0.000000e+00 : f32
    %91 = vector.broadcast %cst_27 : f32 to vector<4x512xf32>
    %92 = arith.select %85, %90, %91 : vector<4x512xi1>, vector<4x512xf32>
    %c0_28 = arith.constant 0 : index
    %c0_29 = arith.constant 0 : index
    %93 = vector.load %arg5[%c0_28, %c0_29] : memref<4x1xf32, #tpu.memory_space<vmem>>, vector<4x1xf32>
    %94 = arith.subf %92, %80 : vector<4x512xf32>
    %95 = arith.mulf %10, %94 : vector<4x512xf32>
    %cst_30 = arith.constant dense<0.000000e+00> : vector<4xf32>
    %96 = vector.multi_reduction <add>, %95, %cst_30 [1] : vector<4x512xf32> to vector<4xf32>
    %97 = vector.shape_cast %96 : vector<4xf32> to vector<4x1xf32>
    %98 = arith.addf %93, %97 : vector<4x1xf32>
    %c0_31 = arith.constant 0 : index
    %c0_32 = arith.constant 0 : index
    %99 = vector.load %arg5[%c0_31, %c0_32] : memref<4x1xf32, #tpu.memory_space<vmem>>, vector<4x1xf32>
    tpu.vector_store %arg5[%c0_31, %c0_32], %98 {strides = array<i32>} : memref<4x1xf32, #tpu.memory_space<vmem>>, vector<4x1xf32>,
    %cst_33 = arith.constant dense<0.000000e+00> : vector<4xf32>
    %100 = vector.multi_reduction <add>, %7, %cst_33 [1] : vector<4x512xf32> to vector<4xf32>
    %101 = vector.shape_cast %100 : vector<4xf32> to vector<4x1xf32>
    %102 = arith.addf %67, %101 : vector<4x1xf32>
    %c0_34 = arith.constant 0 : index
    %c0_35 = arith.constant 0 : index
    %103 = vector.load %arg4[%c0_34, %c0_35] : memref<4x1xf32, #tpu.memory_space<vmem>>, vector<4x1xf32>
    tpu.vector_store %arg4[%c0_34, %c0_35], %102 {strides = array<i32>} : memref<4x1xf32, #tpu.memory_space<vmem>>, vector<4x1xf32>,
    %c0_i32_36 = arith.constant 0 : i32
    %104 = arith.cmpi eq, %arg0, %c0_i32_36 : i32
    %105 = arith.extui %104 : i1 to i32
    %c0_i32_37 = arith.constant 0 : i32
    %106 = arith.cmpi ne, %105, %c0_i32_37 : i32
    scf.if %106 {
      %cst_38 = arith.constant 0.000000e+00 : f32
      %107 = vector.broadcast %cst_38 : f32 to vector<4x1xf32>
      %108 = arith.cmpf ogt, %11, %107 : vector<4x1xf32>
      %cst_39 = arith.constant 1.000000e+00 : f32
      %cst_40 = arith.constant 0.000000e+00 : f32
      %109 = vector.broadcast %cst_39 : f32 to vector<4x1xf32>
      %110 = vector.broadcast %cst_40 : f32 to vector<4x1xf32>
      %111 = arith.select %108, %109, %110 : vector<4x1xi1>, vector<4x1xf32>
      %112 = vector.shape_cast %111 : vector<4x1xf32> to vector<1x4x1xf32>
      %cst_41 = arith.constant dense<0.000000e+00> : vector<1xf32>
      %113 = vector.multi_reduction <add>, %112, %cst_41 [1, 2] : vector<1x4x1xf32> to vector<1xf32>
      %114 = vector.shape_cast %113 : vector<1xf32> to vector<1x1x1xf32>
      %115 = vector.extract %114[0, 0, 0] : f32 from vector<1x1x1xf32>
      %c0_42 = arith.constant 0 : index
      %c0_43 = arith.constant 0 : index
      %116 = vector.load %arg5[%c0_42, %c0_43] : memref<4x1xf32, #tpu.memory_space<vmem>>, vector<4x1xf32>
      %117 = arith.mulf %116, %111 : vector<4x1xf32>
      %118 = vector.shape_cast %117 : vector<4x1xf32> to vector<1x4x1xf32>
      %cst_44 = arith.constant dense<0.000000e+00> : vector<1xf32>
      %119 = vector.multi_reduction <add>, %118, %cst_44 [1, 2] : vector<1x4x1xf32> to vector<1xf32>
      %120 = vector.shape_cast %119 : vector<1xf32> to vector<1x1x1xf32>
      %121 = vector.extract %120[0, 0, 0] : f32 from vector<1x1x1xf32>
      %cst_45 = arith.constant 0.000000e+00 : f32
      %122 = arith.cmpf ogt, %115, %cst_45 : f32
      %cst_46 = arith.constant 1.000000e+00 : f32
      %123 = arith.maximumf %115, %cst_46 : f32
      %124 = arith.divf %121, %123 : f32
      %cst_47 = arith.constant 0.000000e+00 : f32
      %125 = arith.select %122, %124, %cst_47 : f32
      %126 = vector.broadcast %125 : f32 to vector<1x1xf32>
      %c0_48 = arith.constant 0 : index
      %c0_49 = arith.constant 0 : index
      %127 = vector.load %arg3[%c0_48, %c0_49] : memref<1x1xf32, #tpu.memory_space<vmem>>, vector<1x1xf32>
      tpu.vector_store %arg3[%c0_48, %c0_49], %126 {strides = array<i32>} : memref<1x1xf32, #tpu.memory_space<vmem>>, vector<1x1xf32>,
    } else {
    }
    return
  }
  func.func @transform_0(%arg0: i32) -> (i32, i32) {
    %c0_i32 = arith.constant 0 : i32
    %c0_i32_0 = arith.constant 0 : i32
    %c0_i32_1 = arith.constant 0 : i32
    return %c0_i32, %c0_i32_0 : i32, i32
  }
  func.func @transform_1(%arg0: i32) -> (i32, i32) {
    %c0_i32 = arith.constant 0 : i32
    %c0_i32_0 = arith.constant 0 : i32
    return %c0_i32, %arg0 : i32, i32
  }
  func.func @transform_2(%arg0: i32) -> (i32, i32) {
    %c0_i32 = arith.constant 0 : i32
    %c0_i32_0 = arith.constant 0 : i32
    %c0_i32_1 = arith.constant 0 : i32
    return %c0_i32, %c0_i32_0 : i32, i32
  }
}

</mosaic_0001>

<llo_original>
// kernel: lovasz_softmax_loss.2
$region0: #{lovasz_softmax_loss.2}
  #allocation0 [shape = 'u32[]', space=smem, size = 0x4, offset = 0x4, fixed_abs, tag = 'smem constant byte address 0x4 - core index']
  #allocation1 [shape = 'u32[144,128]{1,0:T(1,128)}', space=vmem, size = 0x12000, scoped, tag = 'internal scratch']
  %s0 = inlined_call_operand.vmem [shape: f32[2,4,256], index: 0, kind: input, shape index: {}]
  %s1 = inlined_call_operand.vmem [shape: s32[2,1,256], index: 1, kind: input, shape index: {}]
  %s2 = inlined_call_operand.vmem [shape: f32[4,512], index: 2, kind: output, shape index: {0}]
  %s3 = inlined_call_operand.vmem [shape: f32[4,256], index: 3, kind: output, shape index: {1}]
  %4 = xla_tuple %s2, %s3
  %s5 = sld [smem:[#allocation0]]
  $region49: #{lovasz_softmax_loss.2} parent=0
    _
  %s7 = ssub.s32 1, %s5
  %s8 = scalar_select 0, %s7, %s5
  loop: start=0, step=1, limit=4
  $region2: #{lovasz_softmax_loss.2} parent=0 // loop_pre_header
    _
  $region3: #{lovasz_softmax_loss.2} parent=0 // loop_header
    %s10 = sphi 0, %s14
    %p11 = scmp.ge.s32.totalorder %s10, 4
    %s17 = sphi 0, %s29
    %s18 = sphi 0, %s25
    %s19 = sphi 0, %s17
    %s20 = sphi 0, %s18
    %s21 = sphi 0, %s19
    %s22 = sphi 0, %s20
    %s34 = sphi 0, %s36
    %s37 = sphi 0, %s34
    %s38 = sphi 0, %s37
    %s54 = sphi 0, %s38
    %s62 = sphi 0, %s64
    %s65 = sphi 0, %s62
    %s66 = sphi 0, %s65
    %s82 = sphi 0, %s66
    %s90 = sphi 0, %s92
    %s93 = sphi 0, %s90
    %s94 = sphi 0, %s93
    %s110 = sphi 0, %s94
    %s118 = sphi 0, %s120
    %s121 = sphi 0, %s118
    %s122 = sphi 0, %s121
    %s138 = sphi 0, %s122
  $region4: #{lovasz_softmax_loss.2} parent=0 // loop_header_branch
    %13 = sbr.rel (%p11) target = $region8
  $region5: #{lovasz_softmax_loss.2} parent=0 // loop_body
    %s15 = ssub.s32 %s10, 1
    %s16 = ssub.s32 %s10, 2
    %s23 = sadd.s32 1, %s18
    %p24 = scmp.ge.s32.totalorder %s23, 1
    %s25 = scalar_select %p24, 0, %s23
    %s26 = sadd.s32 1, %s17
    %s27 = scalar_select %p24, %s26, %s17
    %p28 = scmp.ge.s32.totalorder %s27, 2
    %s29 = scalar_select %p28, 0, %s27
    %s30 = ssub.s32 %s17, %s29
    %s31 = ssub.s32 %s18, %s25
    %s32 = sor.u32 %s30, %s31
    %p33 = scmp.eq.s32.totalorder %s32, 0
    %s35 = sadd.s32 %s34, 1
    %s36 = scalar_select %p33, %s34, %s35
    %p39 = pneg %p33
    %p40 = scmp.eq.s32.totalorder %s10, 1
    %p41 = por %p39, %p40
    %p42 = scmp.ne.s32.totalorder %s34, %s37
    %p43 = scmp.eq.s32.totalorder %s10, 0
    %p44 = por %p42, %p43
    %p45 = scmp.ne.s32.totalorder %s34, %s37
    %p46 = scmp.eq.s32.totalorder %s15, 1
    %p47 = por %p45, %p46
    %p48 = scmp.ne.s32.totalorder %s37, %s38
    %p49 = scmp.eq.s32.totalorder %s15, 0
    %p50 = por %p48, %p49
    %p51 = scmp.ne.s32.totalorder %s37, %s38
    %p52 = scmp.eq.s32.totalorder %s16, 1
    %p53 = por %p51, %p52
    %p55 = scmp.ne.s32.totalorder %s38, %s54
    %p56 = scmp.eq.s32.totalorder %s16, 0
    %p57 = por %p55, %p56
    %s58 = ssub.s32 %s17, %s29
    %s59 = ssub.s32 %s18, %s25
    %s60 = sor.u32 %s58, %s59
    %p61 = scmp.eq.s32.totalorder %s60, 0
    %s63 = sadd.s32 %s62, 1
    %s64 = scalar_select %p61, %s62, %s63
    %p67 = pneg %p61
    %p68 = scmp.eq.s32.totalorder %s10, 1
    %p69 = por %p67, %p68
    %p70 = scmp.ne.s32.totalorder %s62, %s65
    %p71 = scmp.eq.s32.totalorder %s10, 0
    %p72 = por %p70, %p71
    %p73 = scmp.ne.s32.totalorder %s62, %s65
    %p74 = scmp.eq.s32.totalorder %s15, 1
    %p75 = por %p73, %p74
    %p76 = scmp.ne.s32.totalorder %s65, %s66
    %p77 = scmp.eq.s32.totalorder %s15, 0
    %p78 = por %p76, %p77
    %p79 = scmp.ne.s32.totalorder %s65, %s66
    %p80 = scmp.eq.s32.totalorder %s16, 1
    %p81 = por %p79, %p80
    %p83 = scmp.ne.s32.totalorder %s66, %s82
    %p84 = scmp.eq.s32.totalorder %s16, 0
    %p85 = por %p83, %p84
    %s86 = sadd.s32 %s17, %s18
    %s87 = sadd.s32 %s29, %s25
    %s88 = ssub.s32 %s86, %s87
    %p89 = scmp.eq.s32.totalorder %s88, 0
    %s91 = sadd.s32 %s90, 1
    %s92 = scalar_select %p89, %s90, %s91
    %p95 = pneg %p89
    %p96 = scmp.eq.s32.totalorder %s10, 1
    %p97 = por %p95, %p96
    %p98 = scmp.ne.s32.totalorder %s90, %s93
    %p99 = scmp.eq.s32.totalorder %s10, 0
    %p100 = por %p98, %p99
    %p101 = scmp.ne.s32.totalorder %s90, %s93
    %p102 = scmp.eq.s32.totalorder %s15, 1
    %p103 = por %p101, %p102
    %p104 = scmp.ne.s32.totalorder %s93, %s94
    %p105 = scmp.eq.s32.totalorder %s15, 0
    %p106 = por %p104, %p105
    %p107 = scmp.ne.s32.totalorder %s93, %s94
    %p108 = scmp.eq.s32.totalorder %s16, 1
    %p109 = por %p107, %p108
    %p111 = scmp.ne.s32.totalorder %s94, %s110
    %p112 = scmp.eq.s32.totalorder %s16, 0
    %p113 = por %p111, %p112
    %s114 = sadd.s32 %s17, %s18
    %s115 = sadd.s32 %s29, %s25
    %s116 = ssub.s32 %s114, %s115
    %p117 = scmp.eq.s32.totalorder %s116, 0
    %s119 = sadd.s32 %s118, 1
    %s120 = scalar_select %p117, %s118, %s119
    %p123 = pneg %p117
    %p124 = scmp.eq.s32.totalorder %s10, 1
    %p125 = por %p123, %p124
    %p126 = scmp.ne.s32.totalorder %s118, %s121
    %p127 = scmp.eq.s32.totalorder %s10, 0
    %p128 = por %p126, %p127
    %p129 = scmp.ne.s32.totalorder %s118, %s121
    %p130 = scmp.eq.s32.totalorder %s15, 1
    %p131 = por %p129, %p130
    %p132 = scmp.ne.s32.totalorder %s121, %s122
    %p133 = scmp.eq.s32.totalorder %s15, 0
    %p134 = por %p132, %p133
    %p135 = scmp.ne.s32.totalorder %s121, %s122
    %p136 = scmp.eq.s32.totalorder %s16, 1
    %p137 = por %p135, %p136
    %p139 = scmp.ne.s32.totalorder %s122, %s138
    %p140 = scmp.eq.s32.totalorder %s16, 0
    %p141 = por %p139, %p140
    %p142 = scmp.le.s32.totalorder 1, %s10
    %p143 = scmp.lt.s32.totalorder %s10, 3
    %p144 = pnand %p142, %p143
    %p145 = pneg %p144
    // Predicated region
    $region9: #{lovasz_softmax_loss.2} parent=5 // pred_check
      _
    $region10: #{lovasz_softmax_loss.2} parent=5 // pred_check_branch
      %147 = sbr.rel (%p144) target = $region12
    $region11: #{lovasz_softmax_loss.2} parent=5 // pred_region
      %s148 = ssub.s32 %s10, 1
    $region12: #{lovasz_softmax_loss.2} parent=5 // pred_fallthru
      _
    %p149 = scmp.lt.s32.totalorder %s10, 2
    // Predicated region
    $region13: #{lovasz_softmax_loss.2} parent=5 // pred_check
      %p150 = pneg %p149
    $region14: #{lovasz_softmax_loss.2} parent=5 // pred_check_branch
      %152 = sbr.rel (%p150) target = $region16
    $region15: #{lovasz_softmax_loss.2} parent=5 // pred_region
      // Predicated region
      $region17: #{lovasz_softmax_loss.2} parent=15 // pred_check
        %p153 = pneg %p44
      $region18: #{lovasz_softmax_loss.2} parent=15 // pred_check_branch
        %155 = sbr.rel (%p153) target = $region20
      $region19: #{lovasz_softmax_loss.2} parent=15 // pred_region
        %s156 = smul.u32 2, %s18
        %p157 = scmp.lt.s32.totalorder %s17, 1
        %s158 = scalar_select %p157, %s17, 1
        %p159 = scmp.lt.s32.totalorder %s156, 1
        %s160 = scalar_select %p159, %s156, 1
        %s161 = smul.addr %s158, 2
        %s162 = sadd.s32 %s160, %s161
        %s163 = smul.addr %s162, 4
        %s164 = scalar_lea.vmem %s0, %s163
        %s165 = smul.u32 2, %s18
      $region20: #{lovasz_softmax_loss.2} parent=15 // pred_fallthru
        _
      // Predicated region
      $region21: #{lovasz_softmax_loss.2} parent=15 // pred_check
        %p166 = pneg %p72
      $region22: #{lovasz_softmax_loss.2} parent=15 // pred_check_branch
        %168 = sbr.rel (%p166) target = $region24
      $region23: #{lovasz_softmax_loss.2} parent=15 // pred_region
        %s169 = smul.u32 2, %s18
        %p170 = scmp.lt.s32.totalorder %s17, 1
        %s171 = scalar_select %p170, %s17, 1
        %p172 = scmp.lt.s32.totalorder %s169, 1
        %s173 = scalar_select %p172, %s169, 1
        %s174 = smul.addr %s171, 2
        %s175 = sadd.s32 %s173, %s174
        %s176 = scalar_lea.vmem %s1, %s175
        %s177 = smul.u32 2, %s18
      $region24: #{lovasz_softmax_loss.2} parent=15 // pred_fallthru
        _
    $region16: #{lovasz_softmax_loss.2} parent=5 // pred_fallthru
      _
    %p178 = scmp.le.s32.totalorder 1, %s10
    %p179 = scmp.lt.s32.totalorder %s10, 3
    %p180 = pnand %p178, %p179
    %p181 = pneg %p180
    // Predicated region
    $region25: #{lovasz_softmax_loss.2} parent=5 // pred_check
      _
    $region26: #{lovasz_softmax_loss.2} parent=5 // pred_check_branch
      %183 = sbr.rel (%p180) target = $region28
    $region27: #{lovasz_softmax_loss.2} parent=5 // pred_region
      %s184 = ssub.s32 %s10, 1
      %s185 = smul.u32 2, %s20
      %p186 = scmp.lt.s32.totalorder %s19, 1
      %s187 = scalar_select %p186, %s19, 1
      %p188 = scmp.lt.s32.totalorder %s185, 1
      %s189 = scalar_select %p188, %s185, 1
      %s190 = smul.addr %s187, 2
      %s191 = sadd.s32 %s189, %s190
      %s192 = smul.addr %s191, 4
      %s193 = scalar_lea.vmem %s0, %s192
      %p194 = pneg %p50
      %p195 = pneg %p47
      %s196 = smul.u32 2, %s20
      %p197 = scmp.lt.s32.totalorder %s19, 1
      %s198 = scalar_select %p197, %s19, 1
      %p199 = scmp.lt.s32.totalorder %s196, 1
      %s200 = scalar_select %p199, %s196, 1
      %s201 = smul.addr %s198, 2
      %s202 = sadd.s32 %s200, %s201
      %s203 = scalar_lea.vmem %s1, %s202
      %p204 = pneg %p78
      %p205 = pneg %p75
      %p206 = pneg %p106
      %p207 = pneg %p103
      %s208 = sadd.s32 %s19, %s20
      %s209 = smul.u32 2, %s208
      %p210 = scmp.lt.s32.totalorder %s209, 3
      %s211 = scalar_select %p210, %s209, 3
      %s212 = smul.addr %s211, 4
      %s213 = scalar_lea.vmem %s2, %s212
      %p214 = pneg %p134
      %p215 = pneg %p131
      %s216 = sadd.s32 %s19, %s20
      %p217 = scmp.lt.s32.totalorder %s216, 1
      %s218 = scalar_select %p217, %s216, 1
      %s219 = smul.addr %s218, 4
      %s220 = scalar_lea.vmem %s3, %s219
      %s221 = smul.u32 2, %s20
      %p222 = scmp.lt.s32.totalorder %s19, 1
      %s223 = scalar_select %p222, %s19, 1
      %p224 = scmp.lt.s32.totalorder %s221, 1
      %s225 = scalar_select %p224, %s221, 1
      %s226 = smul.addr %s223, 2
      %s227 = sadd.s32 %s225, %s226
      %s228 = smul.addr %s227, 4
      %s229 = scalar_lea.vmem %s0, %s228
      %s230 = smul.u32 2, %s20
      %s231 = smul.u32 2, %s20
      %p232 = scmp.lt.s32.totalorder %s19, 1
      %s233 = scalar_select %p232, %s19, 1
      %p234 = scmp.lt.s32.totalorder %s231, 1
      %s235 = scalar_select %p234, %s231, 1
      %s236 = smul.addr %s233, 2
      %s237 = sadd.s32 %s235, %s236
      %s238 = scalar_lea.vmem %s1, %s237
      %s239 = smul.u32 2, %s20
      %s240 = sadd.s32 %s19, %s20
      %s241 = smul.u32 2, %s240
      %p242 = scmp.lt.s32.totalorder %s241, 3
      %s243 = scalar_select %p242, %s241, 3
      %s244 = smul.addr %s243, 4
      %s245 = scalar_lea.vmem %s2, %s244
      %s246 = sadd.s32 %s19, %s20
      %s247 = smul.u32 2, %s246
      %s248 = sadd.s32 %s19, %s20
      %p249 = scmp.lt.s32.totalorder %s248, 1
      %s250 = scalar_select %p249, %s248, 1
      %s251 = smul.addr %s250, 4
      %s252 = scalar_lea.vmem %s3, %s251
      %s253 = sadd.s32 %s19, %s20
      %v254 = vld [vmem:[%s229] sm:$0xff]
      %v256 = vcombine.high %v254, %v254
      %vm258 = vcmask 1043456
      %v259 = vsel %vm258, %v254, -inf
      %v260 = vrot.slane %v259, 4
      %v261 = vmax.f32 %v259, %v260
      %v262 = vrot.slane %v261, 2
      %v263 = vmax.f32 %v261, %v262
      %v264 = vrot.slane %v263, 1
      %v265 = vmax.f32 %v263, %v264
      %v266 = vsel %vm258, %v256, -inf
      %v267 = vrot.slane %v266, 4
      %v268 = vmax.f32 %v266, %v267
      %v269 = vrot.slane %v268, 2
      %v270 = vmax.f32 %v268, %v269
      %v271 = vrot.slane %v270, 1
      %v272 = vmax.f32 %v270, %v271
      %v275 = vcombine.low %v265, %v272
      %v277 = vsub.f32 %v254, %v275
      %v278 = vmul.f32 %v277, 1.442695
      %v279 = vpow.pop %v278
      %v281 = vcombine.high %v279, %v279
      %v283 = vsel %vm258, %v279, 0.0
      %v284 = vrot.slane %v283, 4
      %v285 = vadd.f32 %v283, %v284
      %v286 = vrot.slane %v285, 2
      %v287 = vadd.f32 %v285, %v286
      %v288 = vrot.slane %v287, 1
      %v289 = vadd.f32 %v287, %v288
      %v290 = vsel %vm258, %v281, 0.0
      %v291 = vrot.slane %v290, 4
      %v292 = vadd.f32 %v290, %v291
      %v293 = vrot.slane %v292, 2
      %v294 = vadd.f32 %v292, %v293
      %v295 = vrot.slane %v294, 1
      %v296 = vadd.f32 %v294, %v295
      %v297 = vrcp.pop %v289
      %v298 = vrcp.pop %v296
      %v301 = vcombine.low %v297, %v298
      %v303 = vmul.f32 %v279, %v301
      %v304 = vld [vmem:[%s238] sm:$0x3]
      %v305 = vlaneseq
      %v306 = vand.u32 %v305, 127
      %v307 = vadd.s32 %v306, 128
      %s308 = smul.u32 %s20, 256
      %v309 = vstv %s308
      %v310 = vadd.s32 %v306, %v309
      %v311 = vadd.s32 %v307, %v309
      %vm312 = vcmp.ne.s32.totalorder %v304, 255
      %vm313 = vcmp.lt.s32.totalorder %v310, 256
      %vm314 = vcmp.lt.s32.totalorder %v311, 256
      %v315 = vsel %vm313, 1, 0
      %v316 = vsel %vm314, 1, 0
      %v317 = vcombine.low %v315, %v316
      %v319 = vunpack.c.l.s4 1966171168
      %v320 = vunpack.c.0.s8 %v319
      %v321 = vlaneseq
      %v322 = vshrl.u32 %v321, 7
      %v323 = vsub.s32 %v320, %v322
      %v324 = vrot.slane %v317, %v323
      %v326 = vunpack.c.l.s4 1966171168
      %v327 = vunpack.c.0.s8 %v326
      %v328 = vlaneseq
      %v329 = vshrl.u32 %v328, 7
      %v330 = vsub.s32 %v327, %v329
      %v331 = vrot.slane %v324, %v330
      %vm332 = vcmp.ne.s32.totalorder %v331, 0
      %vm333 = vmand %vm312, %vm332
      %v334 = vlaneseq
      %v335 = vshrl.u32 %v334, 7
      %v336 = vlaneseq
      %v337 = vshrl.u32 %v336, 7
      %v338 = vsub.s32 0, %v337
      %v339 = vrot.slane %v304, %v338
      %v340 = vlaneseq
      %v341 = vshrl.u32 %v340, 7
      %v342 = vsub.s32 1, %v341
      %v343 = vrot.slane %v304, %v342
      %vm344 = vcmp.eq.s32.totalorder %v339, %v335
      %vm345 = vcmp.eq.s32.totalorder %v343, %v335
      %v346 = vsel %vm333, 1, 0
      %v347 = vlaneseq
      %v348 = vshrl.u32 %v347, 7
      %v349 = vsub.s32 0, %v348
      %v350 = vrot.slane %v346, %v349
      %v351 = vlaneseq
      %v352 = vshrl.u32 %v351, 7
      %v353 = vsub.s32 1, %v352
      %v354 = vrot.slane %v346, %v353
      %vm355 = vcmp.eq.s32.totalorder %v350, 1
      %vm356 = vcmp.eq.s32.totalorder %v354, 1
      %vm357 = vmand %vm344, %vm355
      %vm358 = vmand %vm345, %vm356
      %v359 = vsel %vm357, 1.0, 0.0
      %v360 = vsel %vm358, 1.0, 0.0
      %v362 = vcombine.high %v303, %v303
      %v364 = vsub.f32 %v359, %v303
      %v365 = vsub.f32 %v360, %v362
      %v366 = vand.u32 2147483647, %v364
      %v367 = vand.u32 2147483647, %v365
      %v368 = vsel %vm355, %v366, 0.0
      %v369 = vsel %vm356, %v367, 0.0
      %v372 = vand.u32 %v368, 4294967294
      %v373 = vand.u32 %v369, 4294967294
      %v374 = vsel %vm357, 1, 0
      %v375 = vsel %vm358, 1, 0
      %v376 = vor.u32 %v372, %v374
      %v377 = vor.u32 %v373, %v375
      %v380 = vsub.f32 0.0, %v376
      %v381 = vsub.f32 0.0, %v377
      %v384 = vcombine.low %v380, %v381
      %386 = vst [vmem:[%s245] sm:$0xff] %v384
      %v387 = vsel %vm258, %v359, 0.0
      %v388 = vsel %vm258, %v360, 0.0
      %v389 = vadd.f32 %v387, %v388
      %390 = vadd.xlane.f32.xlu0 %v389
      %v391 = vpop.xlane.xlu0 %390
      %vm392 = vcmp.eq.s32.totalorder %v306, 0
      %v393 = vsel %vm392, %v391, 0.0
      %394 = vst [vmem:[%s252] sm:$0xf] %v393
      %s395 = sadd.s32 %s19, %s20
      %s396 = smul.u32 2, %s395
      %p397 = scmp.lt.s32.totalorder %s396, 3
      %s398 = scalar_select %p397, %s396, 3
      %s399 = smul.addr %s398, 4
      %s400 = scalar_lea.vmem %s2, %s399
      %s401 = sadd.s32 %s19, %s20
      %p402 = scmp.lt.s32.totalorder %s401, 1
      %s403 = scalar_select %p402, %s401, 1
      %s404 = smul.addr %s403, 4
      %s405 = scalar_lea.vmem %s3, %s404
      // Predicated region
      $region29: #{lovasz_softmax_loss.2} parent=27 // pred_check
        %p406 = pneg %p103
      $region30: #{lovasz_softmax_loss.2} parent=27 // pred_check_branch
        %408 = sbr.rel (%p406) target = $region32
      $region31: #{lovasz_softmax_loss.2} parent=27 // pred_region
        %s409 = sadd.s32 %s19, %s20
        %s410 = smul.u32 2, %s409
      $region32: #{lovasz_softmax_loss.2} parent=27 // pred_fallthru
        _
      // Predicated region
      $region33: #{lovasz_softmax_loss.2} parent=27 // pred_check
        %p411 = pneg %p131
      $region34: #{lovasz_softmax_loss.2} parent=27 // pred_check_branch
        %413 = sbr.rel (%p411) target = $region36
      $region35: #{lovasz_softmax_loss.2} parent=27 // pred_region
        %s414 = sadd.s32 %s19, %s20
      $region36: #{lovasz_softmax_loss.2} parent=27 // pred_fallthru
        _
    $region28: #{lovasz_softmax_loss.2} parent=5 // pred_fallthru
      _
    %p415 = scmp.le.s32.totalorder 2, %s10
    // Predicated region
    $region37: #{lovasz_softmax_loss.2} parent=5 // pred_check
      %p416 = pneg %p415
    $region38: #{lovasz_softmax_loss.2} parent=5 // pred_check_branch
      %418 = sbr.rel (%p416) target = $region40
    $region39: #{lovasz_softmax_loss.2} parent=5 // pred_region
      %s419 = ssub.s32 %s10, 2
      // Predicated region
      $region41: #{lovasz_softmax_loss.2} parent=39 // pred_check
        %p420 = pneg %p109
      $region42: #{lovasz_softmax_loss.2} parent=39 // pred_check_branch
        %422 = sbr.rel (%p420) target = $region44
      $region43: #{lovasz_softmax_loss.2} parent=39 // pred_region
        %s423 = sadd.s32 %s21, %s22
        %s424 = smul.u32 2, %s423
        %p425 = scmp.lt.s32.totalorder %s424, 3
        %s426 = scalar_select %p425, %s424, 3
        %s427 = smul.addr %s426, 4
        %s428 = scalar_lea.vmem %s2, %s427
      $region44: #{lovasz_softmax_loss.2} parent=39 // pred_fallthru
        _
      // Predicated region
      $region45: #{lovasz_softmax_loss.2} parent=39 // pred_check
        %p429 = pneg %p137
      $region46: #{lovasz_softmax_loss.2} parent=39 // pred_check_branch
        %431 = sbr.rel (%p429) target = $region48
      $region47: #{lovasz_softmax_loss.2} parent=39 // pred_region
        %s432 = sadd.s32 %s21, %s22
        %p433 = scmp.lt.s32.totalorder %s432, 1
        %s434 = scalar_select %p433, %s432, 1
        %s435 = smul.addr %s434, 4
        %s436 = scalar_lea.vmem %s3, %s435
      $region48: #{lovasz_softmax_loss.2} parent=39 // pred_fallthru
        _
    $region40: #{lovasz_softmax_loss.2} parent=5 // pred_fallthru
      _
  $region6: #{lovasz_softmax_loss.2} parent=0 // loop_footer
    %s14 = sadd.s32 1, %s10
  $region7: #{lovasz_softmax_loss.2} parent=0 // loop_footer_branch
    %9 = sbr.rel target = $region3
  $region8: #{lovasz_softmax_loss.2} parent=0 // loop_exit
    _

// kernel: lovasz_softmax_loss.3
$region0: #{lovasz_softmax_loss.3}
  #allocation0 [shape = 'u32[]', space=smem, size = 0x4, offset = 0x4, fixed_abs, tag = 'smem constant byte address 0x4 - core index']
  #allocation1 [shape = 'u32[144,128]{1,0:T(1,128)}', space=vmem, size = 0x12000, scoped, tag = 'internal scratch']
  #allocation2 [shape = 'f32[4,1]{1,0:T(4,128)}', space=vmem, size = 0x800, scoped, tag = 'scratch operand']
  #allocation3 [shape = 'f32[4,1]{1,0:T(4,128)}', space=vmem, size = 0x800, scoped, tag = 'scratch operand']
  %s0 = inlined_call_operand.vmem [shape: f32[4,1], index: 0, kind: input, shape index: {}]
  %s1 = inlined_call_operand.vmem [shape: f32[4,512], index: 1, kind: input, shape index: {}]
  %s2 = inlined_call_operand.hbm [shape: f32[1,1], index: 2, kind: output, shape index: {}]
  %s3 = sld [smem:[#allocation0]]
  $region26: #{lovasz_softmax_loss.3} parent=0
    _
  %s5 = ssub.s32 1, %s3
  %s6 = scalar_select 0, %s5, %s3
  $region1: #{lovasz_softmax_loss.3} parent=0
    #allocation4 [shape = 'u8[512]{0}', space=vmem, size = 0x400, scoped, tag = 'output window, operand 0, single buffered']
    #allocation5 [shape = 's32[1]{0}', space=sflag, size = 0x4, scoped, tag = 'scoped memory for lovasz_softmax_loss.3']
    %7 = vsyncpa [#allocation5], 0
    // Predicated region
    $region2: #{lovasz_softmax_loss.3} parent=1 // pred_check
      _
    $region3: #{lovasz_softmax_loss.3} parent=1 // pred_check_branch
      %9 = sbr.rel (0) target = $region5
    $region4: #{lovasz_softmax_loss.3} parent=1 // pred_region
      _
    $region5: #{lovasz_softmax_loss.3} parent=1 // pred_fallthru
      _
    // Predicated region
    $region6: #{lovasz_softmax_loss.3} parent=1 // pred_check
      _
    $region7: #{lovasz_softmax_loss.3} parent=1 // pred_check_branch
      %11 = sbr.rel (0) target = $region9
    $region8: #{lovasz_softmax_loss.3} parent=1 // pred_region
      _
    $region9: #{lovasz_softmax_loss.3} parent=1 // pred_fallthru
      _
    %p12 = scmp.eq.s32.totalorder 0, 0
    // Predicated region
    $region10: #{lovasz_softmax_loss.3} parent=1 // pred_check
      %p13 = pneg %p12
    $region11: #{lovasz_softmax_loss.3} parent=1 // pred_check_branch
      %15 = sbr.rel (%p13) target = $region13
    $region12: #{lovasz_softmax_loss.3} parent=1 // pred_region
      %vm16 = vcmask 3072
      %17 = vst.msk [vmem:[#allocation2] sm:$0xf] %vm16, 0.0
      %18 = vst.msk [vmem:[#allocation3] sm:$0xf] %vm16, 0.0
    $region13: #{lovasz_softmax_loss.3} parent=1 // pred_fallthru
      _
    %v19 = vld [vmem:[%s1] sm:$0xff]
    %v20 = vld [vmem:[%s1 + $0x8] sm:$0xff]
    %v23 = vcombine.high %v19, %v19
    %v24 = vcombine.high %v20, %v20
    %v25 = vand.u32 %v19, 1
    %v26 = vand.u32 %v23, 1
    %v27 = vand.u32 %v20, 1
    %v28 = vand.u32 %v24, 1
    %v29 = vshrl.u32 %v25, 16
    %v30 = vand.u32 %v25, 65535
    %v31 = vcvt.s32.f32 %v29
    %v32 = vmul.f32 %v31, 65536.0
    %v33 = vcvt.s32.f32 %v30
    %v34 = vadd.f32 %v32, %v33
    %v35 = vshrl.u32 %v26, 16
    %v36 = vand.u32 %v26, 65535
    %v37 = vcvt.s32.f32 %v35
    %v38 = vmul.f32 %v37, 65536.0
    %v39 = vcvt.s32.f32 %v36
    %v40 = vadd.f32 %v38, %v39
    %v41 = vshrl.u32 %v27, 16
    %v42 = vand.u32 %v27, 65535
    %v43 = vcvt.s32.f32 %v41
    %v44 = vmul.f32 %v43, 65536.0
    %v45 = vcvt.s32.f32 %v42
    %v46 = vadd.f32 %v44, %v45
    %v47 = vshrl.u32 %v28, 16
    %v48 = vand.u32 %v28, 65535
    %v49 = vcvt.s32.f32 %v47
    %v50 = vmul.f32 %v49, 65536.0
    %v51 = vcvt.s32.f32 %v48
    %v52 = vadd.f32 %v50, %v51
    %v53 = vand.u32 %v19, 4294967294
    %v54 = vand.u32 %v23, 4294967294
    %v55 = vand.u32 %v20, 4294967294
    %v56 = vand.u32 %v24, 4294967294
    %v61 = vld [vmem:[%s0] sm:$0xf]
    %v62 = vlaneseq
    %v63 = vand.u32 %v62, 127
    %v64 = vadd.s32 %v63, 128
    %v65 = vadd.s32 %v63, 256
    %v66 = vadd.s32 %v63, 384
    %67 = vrot.lane.b32.xlu0 %v34, 1
    %v68 = vpop.permute.xlu0 %67
    %69 = vrot.lane.b32.xlu0 %v40, 1
    %v70 = vpop.permute.xlu0 %69
    %71 = vrot.lane.b32.xlu0 %v46, 1
    %v72 = vpop.permute.xlu0 %71
    %73 = vrot.lane.b32.xlu0 %v52, 1
    %v74 = vpop.permute.xlu0 %73
    %vm75 = vcmp.lt.s32.totalorder %v63, 1
    %v76 = vsel %vm75, %v72, %v74
    %v77 = vsel %vm75, %v70, %v72
    %v78 = vsel %vm75, %v68, %v70
    %v79 = vsel %vm75, %v74, %v68
    %vm80 = vcmp.ge.s32.totalorder %v63, 1
    %vm81 = vcmp.ge.s32.totalorder %v64, 1
    %vm82 = vcmp.ge.s32.totalorder %v65, 1
    %vm83 = vcmp.ge.s32.totalorder %v66, 1
    %v84 = vsel %vm80, %v79, 0.0
    %v85 = vsel %vm81, %v78, 0.0
    %v86 = vsel %vm82, %v77, 0.0
    %v87 = vsel %vm83, %v76, 0.0
    %v88 = vadd.f32 %v34, %v84
    %v89 = vadd.f32 %v40, %v85
    %v90 = vadd.f32 %v46, %v86
    %v91 = vadd.f32 %v52, %v87
    %92 = vrot.lane.b32.xlu0 %v88, 2
    %v93 = vpop.permute.xlu0 %92
    %94 = vrot.lane.b32.xlu0 %v89, 2
    %v95 = vpop.permute.xlu0 %94
    %96 = vrot.lane.b32.xlu0 %v90, 2
    %v97 = vpop.permute.xlu0 %96
    %98 = vrot.lane.b32.xlu0 %v91, 2
    %v99 = vpop.permute.xlu0 %98
    %vm100 = vcmp.lt.s32.totalorder %v63, 2
    %v101 = vsel %vm100, %v97, %v99
    %v102 = vsel %vm100, %v95, %v97
    %v103 = vsel %vm100, %v93, %v95
    %v104 = vsel %vm100, %v99, %v93
    %vm105 = vcmp.ge.s32.totalorder %v63, 2
    %vm106 = vcmp.ge.s32.totalorder %v64, 2
    %vm107 = vcmp.ge.s32.totalorder %v65, 2
    %vm108 = vcmp.ge.s32.totalorder %v66, 2
    %v109 = vsel %vm105, %v104, 0.0
    %v110 = vsel %vm106, %v103, 0.0
    %v111 = vsel %vm107, %v102, 0.0
    %v112 = vsel %vm108, %v101, 0.0
    %v113 = vadd.f32 %v88, %v109
    %v114 = vadd.f32 %v89, %v110
    %v115 = vadd.f32 %v90, %v111
    %v116 = vadd.f32 %v91, %v112
    %117 = vrot.lane.b32.xlu0 %v113, 4
    %v118 = vpop.permute.xlu0 %117
    %119 = vrot.lane.b32.xlu0 %v114, 4
    %v120 = vpop.permute.xlu0 %119
    %121 = vrot.lane.b32.xlu0 %v115, 4
    %v122 = vpop.permute.xlu0 %121
    %123 = vrot.lane.b32.xlu0 %v116, 4
    %v124 = vpop.permute.xlu0 %123
    %vm125 = vcmp.lt.s32.totalorder %v63, 4
    %v126 = vsel %vm125, %v122, %v124
    %v127 = vsel %vm125, %v120, %v122
    %v128 = vsel %vm125, %v118, %v120
    %v129 = vsel %vm125, %v124, %v118
    %vm130 = vcmp.ge.s32.totalorder %v63, 4
    %vm131 = vcmp.ge.s32.totalorder %v64, 4
    %vm132 = vcmp.ge.s32.totalorder %v65, 4
    %vm133 = vcmp.ge.s32.totalorder %v66, 4
    %v134 = vsel %vm130, %v129, 0.0
    %v135 = vsel %vm131, %v128, 0.0
    %v136 = vsel %vm132, %v127, 0.0
    %v137 = vsel %vm133, %v126, 0.0
    %v138 = vadd.f32 %v113, %v134
    %v139 = vadd.f32 %v114, %v135
    %v140 = vadd.f32 %v115, %v136
    %v141 = vadd.f32 %v116, %v137
    %142 = vrot.lane.b32.xlu0 %v138, 8
    %v143 = vpop.permute.xlu0 %142
    %144 = vrot.lane.b32.xlu0 %v139, 8
    %v145 = vpop.permute.xlu0 %144
    %146 = vrot.lane.b32.xlu0 %v140, 8
    %v147 = vpop.permute.xlu0 %146
    %148 = vrot.lane.b32.xlu0 %v141, 8
    %v149 = vpop.permute.xlu0 %148
    %vm150 = vcmp.lt.s32.totalorder %v63, 8
    %v151 = vsel %vm150, %v147, %v149
    %v152 = vsel %vm150, %v145, %v147
    %v153 = vsel %vm150, %v143, %v145
    %v154 = vsel %vm150, %v149, %v143
    %vm155 = vcmp.ge.s32.totalorder %v63, 8
    %vm156 = vcmp.ge.s32.totalorder %v64, 8
    %vm157 = vcmp.ge.s32.totalorder %v65, 8
    %vm158 = vcmp.ge.s32.totalorder %v66, 8
    %v159 = vsel %vm155, %v154, 0.0
    %v160 = vsel %vm156, %v153, 0.0
    %v161 = vsel %vm157, %v152, 0.0
    %v162 = vsel %vm158, %v151, 0.0
    %v163 = vadd.f32 %v138, %v159
    %v164 = vadd.f32 %v139, %v160
    %v165 = vadd.f32 %v140, %v161
    %v166 = vadd.f32 %v141, %v162
    %167 = vrot.lane.b32.xlu0 %v163, 16
    %v168 = vpop.permute.xlu0 %167
    %169 = vrot.lane.b32.xlu0 %v164, 16
    %v170 = vpop.permute.xlu0 %169
    %171 = vrot.lane.b32.xlu0 %v165, 16
    %v172 = vpop.permute.xlu0 %171
    %173 = vrot.lane.b32.xlu0 %v166, 16
    %v174 = vpop.permute.xlu0 %173
    %vm175 = vcmp.lt.s32.totalorder %v63, 16
    %v176 = vsel %vm175, %v172, %v174
    %v177 = vsel %vm175, %v170, %v172
    %v178 = vsel %vm175, %v168, %v170
    %v179 = vsel %vm175, %v174, %v168
    %vm180 = vcmp.ge.s32.totalorder %v63, 16
    %vm181 = vcmp.ge.s32.totalorder %v64, 16
    %vm182 = vcmp.ge.s32.totalorder %v65, 16
    %vm183 = vcmp.ge.s32.totalorder %v66, 16
    %v184 = vsel %vm180, %v179, 0.0
    %v185 = vsel %vm181, %v178, 0.0
    %v186 = vsel %vm182, %v177, 0.0
    %v187 = vsel %vm183, %v176, 0.0
    %v188 = vadd.f32 %v163, %v184
    %v189 = vadd.f32 %v164, %v185
    %v190 = vadd.f32 %v165, %v186
    %v191 = vadd.f32 %v166, %v187
    %192 = vrot.lane.b32.xlu0 %v188, 32
    %v193 = vpop.permute.xlu0 %192
    %194 = vrot.lane.b32.xlu0 %v189, 32
    %v195 = vpop.permute.xlu0 %194
    %196 = vrot.lane.b32.xlu0 %v190, 32
    %v197 = vpop.permute.xlu0 %196
    %198 = vrot.lane.b32.xlu0 %v191, 32
    %v199 = vpop.permute.xlu0 %198
    %vm200 = vcmp.lt.s32.totalorder %v63, 32
    %v201 = vsel %vm200, %v197, %v199
    %v202 = vsel %vm200, %v195, %v197
    %v203 = vsel %vm200, %v193, %v195
    %v204 = vsel %vm200, %v199, %v193
    %vm205 = vcmp.ge.s32.totalorder %v63, 32
    %vm206 = vcmp.ge.s32.totalorder %v64, 32
    %vm207 = vcmp.ge.s32.totalorder %v65, 32
    %vm208 = vcmp.ge.s32.totalorder %v66, 32
    %v209 = vsel %vm205, %v204, 0.0
    %v210 = vsel %vm206, %v203, 0.0
    %v211 = vsel %vm207, %v202, 0.0
    %v212 = vsel %vm208, %v201, 0.0
    %v213 = vadd.f32 %v188, %v209
    %v214 = vadd.f32 %v189, %v210
    %v215 = vadd.f32 %v190, %v211
    %v216 = vadd.f32 %v191, %v212
    %217 = vrot.lane.b32.xlu0 %v213, 64
    %v218 = vpop.permute.xlu0 %217
    %219 = vrot.lane.b32.xlu0 %v214, 64
    %v220 = vpop.permute.xlu0 %219
    %221 = vrot.lane.b32.xlu0 %v215, 64
    %v222 = vpop.permute.xlu0 %221
    %223 = vrot.lane.b32.xlu0 %v216, 64
    %v224 = vpop.permute.xlu0 %223
    %vm225 = vcmp.lt.s32.totalorder %v63, 64
    %v226 = vsel %vm225, %v222, %v224
    %v227 = vsel %vm225, %v220, %v222
    %v228 = vsel %vm225, %v218, %v220
    %v229 = vsel %vm225, %v224, %v218
    %vm230 = vcmp.ge.s32.totalorder %v63, 64
    %vm231 = vcmp.ge.s32.totalorder %v64, 64
    %vm232 = vcmp.ge.s32.totalorder %v65, 64
    %vm233 = vcmp.ge.s32.totalorder %v66, 64
    %v234 = vsel %vm230, %v229, 0.0
    %v235 = vsel %vm231, %v228, 0.0
    %v236 = vsel %vm232, %v227, 0.0
    %v237 = vsel %vm233, %v226, 0.0
    %v238 = vadd.f32 %v213, %v234
    %v239 = vadd.f32 %v214, %v235
    %v240 = vadd.f32 %v215, %v236
    %v241 = vadd.f32 %v216, %v237
    %vm242 = vcmp.ge.s32.totalorder %v63, 128
    %vm243 = vcmp.ge.s32.totalorder %v64, 128
    %vm244 = vcmp.ge.s32.totalorder %v65, 128
    %vm245 = vcmp.ge.s32.totalorder %v66, 128
    %v246 = vsel %vm242, %v241, 0.0
    %v247 = vsel %vm243, %v238, 0.0
    %v248 = vsel %vm244, %v239, 0.0
    %v249 = vsel %vm245, %v240, 0.0
    %v250 = vadd.f32 %v238, %v246
    %v251 = vadd.f32 %v239, %v247
    %v252 = vadd.f32 %v240, %v248
    %v253 = vadd.f32 %v241, %v249
    %vm254 = vcmp.ge.s32.totalorder %v63, 256
    %vm255 = vcmp.ge.s32.totalorder %v64, 256
    %vm256 = vcmp.ge.s32.totalorder %v65, 256
    %vm257 = vcmp.ge.s32.totalorder %v66, 256
    %v258 = vsel %vm254, %v252, 0.0
    %v259 = vsel %vm255, %v253, 0.0
    %v260 = vsel %vm256, %v250, 0.0
    %v261 = vsel %vm257, %v251, 0.0
    %v262 = vadd.f32 %v250, %v258
    %v263 = vadd.f32 %v251, %v259
    %v264 = vadd.f32 %v252, %v260
    %v265 = vadd.f32 %v253, %v261
    %v266 = vld [vmem:[#allocation2] sm:$0xf]
    %268 = vset.pattern.permute.xlu0 0
    %269 = vperm.xlu0 %268, %v266
    %v270 = vpop.permute.xlu0 %269
    %v272 = vadd.f32 %v270, %v262
    %v273 = vadd.f32 %v270, %v263
    %v274 = vadd.f32 %v270, %v264
    %v275 = vadd.f32 %v270, %v265
    %s276 = smul.u32 0, 512
    %v277 = vstv %s276
    %v278 = vadd.s32 %v63, %v277
    %v279 = vadd.s32 %v64, %v277
    %v280 = vadd.s32 %v65, %v277
    %v281 = vadd.s32 %v66, %v277
    %v282 = vadd.s32 %v278, 1
    %v283 = vadd.s32 %v279, 1
    %v284 = vadd.s32 %v280, 1
    %v285 = vadd.s32 %v281, 1
    %v286 = vcvt.s32.f32 %v282
    %v287 = vcvt.s32.f32 %v283
    %v288 = vcvt.s32.f32 %v284
    %v289 = vcvt.s32.f32 %v285
    %291 = vset.pattern.permute.xlu0 0
    %292 = vperm.xlu0 %291, %v61
    %v293 = vpop.permute.xlu0 %292
    %v295 = vadd.f32 %v293, %v286
    %v296 = vadd.f32 %v293, %v287
    %v297 = vadd.f32 %v293, %v288
    %v298 = vadd.f32 %v293, %v289
    %v299 = vsub.f32 %v295, %v272
    %v300 = vsub.f32 %v296, %v273
    %v301 = vsub.f32 %v297, %v274
    %v302 = vsub.f32 %v298, %v275
    %v303 = vrcp.pop %v299
    %v304 = vrcp.pop %v300
    %v305 = vrcp.pop %v301
    %v306 = vrcp.pop %v302
    %v307 = vmul.f32 %v286, %v303
    %v308 = vmul.f32 %v287, %v304
    %v309 = vmul.f32 %v288, %v305
    %v310 = vmul.f32 %v289, %v306
    %v311 = vsub.f32 %v286, 1.0
    %v312 = vsub.f32 %v287, 1.0
    %v313 = vsub.f32 %v288, 1.0
    %v314 = vsub.f32 %v289, 1.0
    %v315 = vsub.f32 %v272, %v34
    %v316 = vsub.f32 %v273, %v40
    %v317 = vsub.f32 %v274, %v46
    %v318 = vsub.f32 %v275, %v52
    %vm319 = vcmp.gt.f32.partialorder %v311, 0.0
    %vm320 = vcmp.gt.f32.partialorder %v312, 0.0
    %vm321 = vcmp.gt.f32.partialorder %v313, 0.0
    %vm322 = vcmp.gt.f32.partialorder %v314, 0.0
    %v323 = vadd.f32 %v293, %v311
    %v324 = vadd.f32 %v293, %v312
    %v325 = vadd.f32 %v293, %v313
    %v326 = vadd.f32 %v293, %v314
    %v327 = vsub.f32 %v323, %v315
    %v328 = vsub.f32 %v324, %v316
    %v329 = vsub.f32 %v325, %v317
    %v330 = vsub.f32 %v326, %v318
    %v331 = vrcp.pop %v327
    %v332 = vrcp.pop %v328
    %v333 = vrcp.pop %v329
    %v334 = vrcp.pop %v330
    %v335 = vmul.f32 %v311, %v331
    %v336 = vmul.f32 %v312, %v332
    %v337 = vmul.f32 %v313, %v333
    %v338 = vmul.f32 %v314, %v334
    %v339 = vsel %vm319, %v335, 0.0
    %v340 = vsel %vm320, %v336, 0.0
    %v341 = vsel %vm321, %v337, 0.0
    %v342 = vsel %vm322, %v338, 0.0
    %v343 = vld [vmem:[#allocation3] sm:$0xf]
    %v344 = vsub.f32 %v339, %v307
    %v345 = vsub.f32 %v340, %v308
    %v346 = vsub.f32 %v341, %v309
    %v347 = vsub.f32 %v342, %v310
    %v348 = vmul.f32 %v53, %v344
    %v349 = vmul.f32 %v54, %v345
    %v350 = vmul.f32 %v55, %v346
    %v351 = vmul.f32 %v56, %v347
    %vm352 = vcmask 1043456
    %v353 = vsel %vm352, %v348, 0.0
    %v354 = vsel %vm352, %v349, 0.0
    %v355 = vadd.f32 %v353, %v354
    %v356 = vsel %vm352, %v350, 0.0
    %v357 = vadd.f32 %v355, %v356
    %v358 = vsel %vm352, %v351, 0.0
    %v359 = vadd.f32 %v357, %v358
    %360 = vadd.xlane.f32.xlu0 %v359
    %v361 = vpop.xlane.xlu0 %360
    %v362 = vadd.f32 %v343, %v361
    %vm363 = vcmask 3072
    %364 = vst.msk [vmem:[#allocation3] sm:$0xf] %vm363, %v362
    %v365 = vsel %vm352, %v34, 0.0
    %v366 = vsel %vm352, %v40, 0.0
    %v367 = vadd.f32 %v365, %v366
    %v368 = vsel %vm352, %v46, 0.0
    %v369 = vadd.f32 %v367, %v368
    %v370 = vsel %vm352, %v52, 0.0
    %v371 = vadd.f32 %v369, %v370
    %372 = vadd.xlane.f32.xlu0 %v371
    %v373 = vpop.xlane.xlu0 %372
    %v374 = vadd.f32 %v266, %v373
    %375 = vst.msk [vmem:[#allocation2] sm:$0xf] %vm363, %v374
    // Predicated region
    $region14: #{lovasz_softmax_loss.3} parent=1 // pred_check
      %p376 = pneg %p12
    $region15: #{lovasz_softmax_loss.3} parent=1 // pred_check_branch
      %378 = sbr.rel (%p376) target = $region17
    $region16: #{lovasz_softmax_loss.3} parent=1 // pred_region
      %vm379 = vcmp.gt.f32.partialorder %v61, 0.0
      %v380 = vsel %vm379, 1.0, 0.0
      %v381 = vsel %vm363, %v380, 0.0
      %382 = vadd.xlane.f32.xlu0 %v381
      %v383 = vpop.xlane.xlu0 %382
      %v384 = vrot.slane %v383, 4
      %v385 = vadd.f32 %v383, %v384
      %v386 = vrot.slane %v385, 2
      %v387 = vadd.f32 %v385, %v386
      %v388 = vrot.slane %v387, 1
      %v389 = vadd.f32 %v387, %v388
      %s390 = vtos %v389
      %v391 = vld [vmem:[#allocation3] sm:$0xf]
      %v392 = vmul.f32 %v391, %v380
      %v393 = vsel %vm363, %v392, 0.0
      %394 = vadd.xlane.f32.xlu0 %v393
      %v395 = vpop.xlane.xlu0 %394
      %v396 = vrot.slane %v395, 4
      %v397 = vadd.f32 %v395, %v396
      %v398 = vrot.slane %v397, 2
      %v399 = vadd.f32 %v397, %v398
      %v400 = vrot.slane %v399, 1
      %v401 = vadd.f32 %v399, %v400
      %s402 = vtos %v401
      %p403 = scmp.gt.f32.partialorder %s390, 0.0
      %s404 = smax.f32 %s390, 1.0
      %v405 = vstv %s404
      %v406 = vrcp.pop %v405
      %s407 = vtos %v406
      %s408 = smul.f32 %s402, %s407
      %s409 = scalar_select %p403, %s408, 0.0
      %v410 = vstv %s409
      %vm411 = vcmask 0
      %412 = vst.msk [vmem:[#allocation4] sm:$0x1] %vm411, %v410
    $region17: #{lovasz_softmax_loss.3} parent=1 // pred_fallthru
      _
    // Predicated region
    $region18: #{lovasz_softmax_loss.3} parent=1 // pred_check
      _
    $region19: #{lovasz_softmax_loss.3} parent=1 // pred_check_branch
      %414 = sbr.rel (0) target = $region21
    $region20: #{lovasz_softmax_loss.3} parent=1 // pred_region
      %s416 = ssub.s32 16, 16
      %417 = vsyncadd [#allocation5], %s416
      %s419 = sshll.u32 [#allocation4], 4
      %s420 = int_to_ptr.vmem [resolvable:$true] %s419
      %422 = dma.vmem_to_hbm [thread:$0]  %s420, 16, %s2, [#allocation5]
    $region21: #{lovasz_softmax_loss.3} parent=1 // pred_fallthru
      _
    // Predicated region
    $region22: #{lovasz_softmax_loss.3} parent=1 // pred_check
      _
    $region23: #{lovasz_softmax_loss.3} parent=1 // pred_check_branch
      %424 = sbr.rel (0) target = $region25
    $region24: #{lovasz_softmax_loss.3} parent=1 // pred_region
      %425 = dma.done [#allocation5], 16
    $region25: #{lovasz_softmax_loss.3} parent=1 // pred_fallthru
      _
    %426 = vsyncpa [#allocation5], 1

</llo_original>
